<compile_context>
chip_gen: v7x
topology: tpu7x:2x2x1
jax: 0.10.0
libtpu: 0.0.40
codegen_flags: <defaults>
</compile_context>

<pallas_src>
import jax
import jax.numpy as jnp
import numpy as np
from jax.experimental import pallas as pl
from jax.experimental.pallas import tpu as pltpu


# ----------------------------------------------------------------------------
# Kernel: whole forward pass in one invocation (no grid).
# ----------------------------------------------------------------------------
def rnn_seq_kernel(
    x_ref,        # (B, T)   full input sequence (VMEM)
    wihx_ref,     # (1, H)   i2h weight, input column (transposed)
    wihh_ref,     # (H, H)   i2h weight, hidden columns (transposed)
    bih_ref,      # (1, H)   i2h bias
    wiox_ref,     # (1, Cp)  i2o weight, input column (transposed, lane-padded)
    wioh_ref,     # (H, Cp)  i2o weight, hidden columns (transposed, lane-padded)
    bio_ref,      # (1, Cp)  i2o bias (padded lanes = -1e30 so softmax ignores them)
    whg1_ref,     # (Cp, Cp) hg[0] weight (transposed, zero-padded)
    bhg1_ref,     # (1, Cp)  hg[0] bias (zero-padded)
    whg2_ref,     # (1, Cp)  hg[1] weight as a row vector (zero-padded)
    bhg2_ref,     # (1,)     hg[1] bias (SMEM scalar)
    out_ref,      # (B, 1)   final output
):
    B, T = x_ref.shape
    H = wihh_ref.shape[0]

    # tanh(cat(x, h)) == cat(tanh(x), tanh(h)) -> split the linears instead of concat.
    tx_all = jnp.tanh(x_ref[...])                     # (B, T), one VPU pass for all steps

    wihx = wihx_ref[...]                              # (1, H)
    wihh = wihh_ref[...]                              # (H, H)
    bih = bih_ref[...]                                # (1, H)

    h = jnp.zeros((B, H), jnp.float32)

    # Recurrence for steps 0 .. T-2.  (The PyTorch loop also updates h at step T-1,
    # but that value is never consumed -> skipped as dead work.)
    for t in range(T - 1):                            # fully unrolled; T is small/static
        tx_t = tx_all[:, t:t + 1]                     # (B, 1) static lane slice
        th = jnp.tanh(h)                              # (B, H)
        h = (tx_t * wihx                              # rank-1 update on the VPU, not MXU
             + jnp.dot(th, wihh, preferred_element_type=jnp.float32)
             + bih)

    # Final step: i2o logits -> softmax over classes -> hg head.
    tx_t = tx_all[:, T - 1:T]                         # (B, 1)
    th = jnp.tanh(h)                                  # (B, H)
    o = (tx_t * wiox_ref[...]                         # rank-1 -> VPU
         + jnp.dot(th, wioh_ref[...], preferred_element_type=jnp.float32)
         + bio_ref[...])                              # (B, Cp); padded logits ~ -1e30

    m = jnp.max(o, axis=1, keepdims=True)
    e = jnp.exp(o - m)
    p = e / jnp.sum(e, axis=1, keepdims=True)         # softmax; padded lanes are exactly 0

    h1 = (jnp.dot(p, whg1_ref[...], preferred_element_type=jnp.float32)
          + bhg1_ref[...])                            # (B, Cp); padded lanes are 0

    # hg[1]: N=1 matmul replaced by (B,Cp)*(1,Cp) elementwise mul + lane reduce.
    out = jnp.sum(h1 * whg2_ref[...], axis=1, keepdims=True) + bhg2_ref[0]
    out_ref[...] = out                                # (B, 1)


# ----------------------------------------------------------------------------
# Wrapper
# ----------------------------------------------------------------------------
def rnn_ori_sequential_forward(x, params):
    """x: (B, T) float32 with T > 2 (sequential branch). Returns (B, 1) float32."""
    B, T = x.shape

    vmem = pl.BlockSpec(memory_space=pltpu.MemorySpace.VMEM)
    smem = pl.BlockSpec(memory_space=pltpu.MemorySpace.SMEM)

    weights = (
        params["wihx_t"], params["wihh_t"], params["b_ih"],
        params["wiox_p"], params["wioh_p"], params["b_io_p"],
        params["whg1_p"], params["b_hg1_p"], params["whg2_p"],
    )

    return pl.pallas_call(
        rnn_seq_kernel,
        out_shape=jax.ShapeDtypeStruct((B, 1), jnp.float32),
        in_specs=[vmem] * (1 + len(weights)) + [smem],
        out_specs=vmem,
    )(x, *weights, params["b_hg2_s"])


# ----------------------------------------------------------------------------
# Deterministic parameter init (PyTorch nn.Linear-style uniform bounds) + padding
# ----------------------------------------------------------------------------
def init_params(key, hidden_size, num_classes):
    def linear(k, fan_in, fan_out):
        kw, kb = jax.random.split(k)
        bound = 1.0 / np.sqrt(fan_in)
        w = jax.random.uniform(kw, (fan_out, fan_in), jnp.float32, -bound, bound)
        b = jax.random.uniform(kb, (fan_out,), jnp.float32, -bound, bound)
        return w, b

    k1, k2, k3, k4 = jax.random.split(key, 4)
    w_i2h, b_i2h = linear(k1, 1 + hidden_size, hidden_size)   # (H, 1+H)
    w_i2o, b_i2o = linear(k2, 1 + hidden_size, num_classes)   # (C, 1+H)
    w_hg1, b_hg1 = linear(k3, num_classes, num_classes)       # (C, C)
    w_hg2, b_hg2 = linear(k4, num_classes, 1)                 # (1, C)

    C = num_classes
    Cp = ((C + 127) // 128) * 128                             # lane-dense class dim
    NEG = -1e30

    def pad_last(a, width, fill=0.0):
        return jnp.pad(a, ((0, 0), (0, width - a.shape[1])), constant_values=fill)

    wiox_t = jnp.transpose(w_i2o[:, :1])        # (1, C)
    wioh_t = jnp.transpose(w_i2o[:, 1:])        # (H, C)
    whg1_t = jnp.transpose(w_hg1)               # (C, C)
    whg2_row = w_hg2                            # (1, C)  already a row vector (FIX)

    params = {
        # recurrence (split concat columns, pre-transposed to (in, out))
        "wihx_t": jnp.transpose(w_i2h[:, :1]),              # (1, H)
        "wihh_t": jnp.transpose(w_i2h[:, 1:]),              # (H, H)
        "b_ih":   b_i2h.reshape(1, -1),                     # (1, H)
        # classifier path, lane-padded to Cp
        "wiox_p": pad_last(wiox_t, Cp),                     # (1, Cp)
        "wioh_p": pad_last(wioh_t, Cp),                     # (H, Cp)
        "b_io_p": pad_last(b_i2o.reshape(1, -1), Cp, NEG),  # (1, Cp); pads -> -1e30
        "whg1_p": jnp.pad(whg1_t, ((0, Cp - C), (0, Cp - C))),  # (Cp, Cp)
        "b_hg1_p": pad_last(b_hg1.reshape(1, -1), Cp),      # (1, Cp)
        "whg2_p": pad_last(whg2_row, Cp),                   # (1, Cp)
        "b_hg2_s": b_hg2.reshape(1,),                       # (1,)  SMEM scalar
    }
    raw = {"w_i2h": w_i2h, "b_i2h": b_i2h, "w_i2o": w_i2o, "b_i2o": b_i2o,
           "w_hg1": w_hg1, "b_hg1": b_hg1, "w_hg2": w_hg2, "b_hg2": b_hg2}
    return params, raw


# Plain-JAX reference mirroring the PyTorch forward (sequence branch).
def reference_forward(x, raw, hidden_size):
    B, T = x.shape
    h = jnp.zeros((B, hidden_size), jnp.float32)
    out = None
    for i in range(T):
        xi = x[:, i:i + 1]                                    # (B, 1)
        comb = jnp.tanh(jnp.concatenate([xi, h], axis=1))     # (B, 1+H)
        h_new = comb @ raw["w_i2h"].T + raw["b_i2h"]
        o = comb @ raw["w_i2o"].T + raw["b_i2o"]
        out = jax.nn.softmax(o, axis=1)                       # nn.Softmax -> dim=1 for 2D
        h = h_new
    out = out @ raw["w_hg1"].T + raw["b_hg1"]
    out = out @ raw["w_hg2"].T + raw["b_hg2"]
    return out


if __name__ == "__main__":
    B, T = 8, 8            # batch, sequence length (T > 2 -> sequential branch)
    HIDDEN = 32
    NUM_CLASSES = 100      # module default

    key = jax.random.PRNGKey(0)
    kx, kp = jax.random.split(key)
    x = jax.random.normal(kx, (B, T), jnp.float32)

    params, raw = init_params(kp, HIDDEN, NUM_CLASSES)

    out = rnn_ori_sequential_forward(x, params)
    out = jax.block_until_ready(out)

    ref = reference_forward(x, raw, HIDDEN)
    assert out.shape == (B, 1)
    np.testing.assert_allclose(np.asarray(out), np.asarray(ref),
                               rtol=1e-4, atol=1e-5)
    print("KERNEL_OK")
</pallas_src>

<mosaic_0001>
module attributes {stable_mosaic.version = 11 : i64} {
  func.func @rnn_seq_kernel(%arg0: memref<8x8xf32, #tpu.memory_space<vmem>>, %arg1: memref<1x32xf32, #tpu.memory_space<vmem>>, %arg2: memref<32x32xf32, #tpu.memory_space<vmem>>, %arg3: memref<1x32xf32, #tpu.memory_space<vmem>>, %arg4: memref<1x128xf32, #tpu.memory_space<vmem>>, %arg5: memref<32x128xf32, #tpu.memory_space<vmem>>, %arg6: memref<1x128xf32, #tpu.memory_space<vmem>>, %arg7: memref<128x128xf32, #tpu.memory_space<vmem>>, %arg8: memref<1x128xf32, #tpu.memory_space<vmem>>, %arg9: memref<1x128xf32, #tpu.memory_space<vmem>>, %arg10: memref<1xf32, #tpu.memory_space<smem>>, %arg11: memref<8x1xf32, #tpu.memory_space<vmem>>) attributes {dimension_semantics = [], scalar_prefetch = 0 : i64, scratch_operands = 0 : i64, tpu.core_type = #tpu.core_type<tc>} {
    %c0 = arith.constant 0 : index
    %c0_0 = arith.constant 0 : index
    %0 = vector.load %arg0[%c0, %c0_0] : memref<8x8xf32, #tpu.memory_space<vmem>>, vector<8x8xf32>
    %1 = math.tanh %0 : vector<8x8xf32>
    %c0_1 = arith.constant 0 : index
    %c0_2 = arith.constant 0 : index
    %2 = vector.load %arg1[%c0_1, %c0_2] : memref<1x32xf32, #tpu.memory_space<vmem>>, vector<1x32xf32>
    %c0_3 = arith.constant 0 : index
    %c0_4 = arith.constant 0 : index
    %3 = vector.load %arg2[%c0_3, %c0_4] : memref<32x32xf32, #tpu.memory_space<vmem>>, vector<32x32xf32>
    %c0_5 = arith.constant 0 : index
    %c0_6 = arith.constant 0 : index
    %4 = vector.load %arg3[%c0_5, %c0_6] : memref<1x32xf32, #tpu.memory_space<vmem>>, vector<1x32xf32>
    %cst = arith.constant 0.000000e+00 : f32
    %5 = vector.broadcast %cst : f32 to vector<8x32xf32>
    %6 = vector.extract_strided_slice %1 {offsets = [0, 0], sizes = [8, 1], strides = [1, 1]} : vector<8x8xf32> to vector<8x1xf32>
    %7 = math.tanh %5 : vector<8x32xf32>
    %8 = vector.broadcast %6 : vector<8x1xf32> to vector<8x32xf32>
    %9 = vector.broadcast %2 : vector<1x32xf32> to vector<8x32xf32>
    %10 = arith.mulf %8, %9 : vector<8x32xf32>
    %cst_7 = arith.constant dense<0.000000e+00> : vector<8x32xf32>
    %11 = tpu.matmul %7, %3, %cst_7 {dimension_numbers = #tpu.dot_dimension_numbers<[1], [0], [0], [1], [0, 0, 1, 1], [], []>} : vector<8x32xf32>, vector<32x32xf32>, vector<8x32xf32> -> vector<8x32xf32>
    %12 = arith.addf %10, %11 : vector<8x32xf32>
    %13 = vector.broadcast %4 : vector<1x32xf32> to vector<8x32xf32>
    %14 = arith.addf %12, %13 : vector<8x32xf32>
    %15 = vector.extract_strided_slice %1 {offsets = [0, 1], sizes = [8, 1], strides = [1, 1]} : vector<8x8xf32> to vector<8x1xf32>
    %16 = math.tanh %14 : vector<8x32xf32>
    %17 = vector.broadcast %15 : vector<8x1xf32> to vector<8x32xf32>
    %18 = vector.broadcast %2 : vector<1x32xf32> to vector<8x32xf32>
    %19 = arith.mulf %17, %18 : vector<8x32xf32>
    %cst_8 = arith.constant dense<0.000000e+00> : vector<8x32xf32>
    %20 = tpu.matmul %16, %3, %cst_8 {dimension_numbers = #tpu.dot_dimension_numbers<[1], [0], [0], [1], [0, 0, 1, 1], [], []>} : vector<8x32xf32>, vector<32x32xf32>, vector<8x32xf32> -> vector<8x32xf32>
    %21 = arith.addf %19, %20 : vector<8x32xf32>
    %22 = vector.broadcast %4 : vector<1x32xf32> to vector<8x32xf32>
    %23 = arith.addf %21, %22 : vector<8x32xf32>
    %24 = vector.extract_strided_slice %1 {offsets = [0, 2], sizes = [8, 1], strides = [1, 1]} : vector<8x8xf32> to vector<8x1xf32>
    %25 = math.tanh %23 : vector<8x32xf32>
    %26 = vector.broadcast %24 : vector<8x1xf32> to vector<8x32xf32>
    %27 = vector.broadcast %2 : vector<1x32xf32> to vector<8x32xf32>
    %28 = arith.mulf %26, %27 : vector<8x32xf32>
    %cst_9 = arith.constant dense<0.000000e+00> : vector<8x32xf32>
    %29 = tpu.matmul %25, %3, %cst_9 {dimension_numbers = #tpu.dot_dimension_numbers<[1], [0], [0], [1], [0, 0, 1, 1], [], []>} : vector<8x32xf32>, vector<32x32xf32>, vector<8x32xf32> -> vector<8x32xf32>
    %30 = arith.addf %28, %29 : vector<8x32xf32>
    %31 = vector.broadcast %4 : vector<1x32xf32> to vector<8x32xf32>
    %32 = arith.addf %30, %31 : vector<8x32xf32>
    %33 = vector.extract_strided_slice %1 {offsets = [0, 3], sizes = [8, 1], strides = [1, 1]} : vector<8x8xf32> to vector<8x1xf32>
    %34 = math.tanh %32 : vector<8x32xf32>
    %35 = vector.broadcast %33 : vector<8x1xf32> to vector<8x32xf32>
    %36 = vector.broadcast %2 : vector<1x32xf32> to vector<8x32xf32>
    %37 = arith.mulf %35, %36 : vector<8x32xf32>
    %cst_10 = arith.constant dense<0.000000e+00> : vector<8x32xf32>
    %38 = tpu.matmul %34, %3, %cst_10 {dimension_numbers = #tpu.dot_dimension_numbers<[1], [0], [0], [1], [0, 0, 1, 1], [], []>} : vector<8x32xf32>, vector<32x32xf32>, vector<8x32xf32> -> vector<8x32xf32>
    %39 = arith.addf %37, %38 : vector<8x32xf32>
    %40 = vector.broadcast %4 : vector<1x32xf32> to vector<8x32xf32>
    %41 = arith.addf %39, %40 : vector<8x32xf32>
    %42 = vector.extract_strided_slice %1 {offsets = [0, 4], sizes = [8, 1], strides = [1, 1]} : vector<8x8xf32> to vector<8x1xf32>
    %43 = math.tanh %41 : vector<8x32xf32>
    %44 = vector.broadcast %42 : vector<8x1xf32> to vector<8x32xf32>
    %45 = vector.broadcast %2 : vector<1x32xf32> to vector<8x32xf32>
    %46 = arith.mulf %44, %45 : vector<8x32xf32>
    %cst_11 = arith.constant dense<0.000000e+00> : vector<8x32xf32>
    %47 = tpu.matmul %43, %3, %cst_11 {dimension_numbers = #tpu.dot_dimension_numbers<[1], [0], [0], [1], [0, 0, 1, 1], [], []>} : vector<8x32xf32>, vector<32x32xf32>, vector<8x32xf32> -> vector<8x32xf32>
    %48 = arith.addf %46, %47 : vector<8x32xf32>
    %49 = vector.broadcast %4 : vector<1x32xf32> to vector<8x32xf32>
    %50 = arith.addf %48, %49 : vector<8x32xf32>
    %51 = vector.extract_strided_slice %1 {offsets = [0, 5], sizes = [8, 1], strides = [1, 1]} : vector<8x8xf32> to vector<8x1xf32>
    %52 = math.tanh %50 : vector<8x32xf32>
    %53 = vector.broadcast %51 : vector<8x1xf32> to vector<8x32xf32>
    %54 = vector.broadcast %2 : vector<1x32xf32> to vector<8x32xf32>
    %55 = arith.mulf %53, %54 : vector<8x32xf32>
    %cst_12 = arith.constant dense<0.000000e+00> : vector<8x32xf32>
    %56 = tpu.matmul %52, %3, %cst_12 {dimension_numbers = #tpu.dot_dimension_numbers<[1], [0], [0], [1], [0, 0, 1, 1], [], []>} : vector<8x32xf32>, vector<32x32xf32>, vector<8x32xf32> -> vector<8x32xf32>
    %57 = arith.addf %55, %56 : vector<8x32xf32>
    %58 = vector.broadcast %4 : vector<1x32xf32> to vector<8x32xf32>
    %59 = arith.addf %57, %58 : vector<8x32xf32>
    %60 = vector.extract_strided_slice %1 {offsets = [0, 6], sizes = [8, 1], strides = [1, 1]} : vector<8x8xf32> to vector<8x1xf32>
    %61 = math.tanh %59 : vector<8x32xf32>
    %62 = vector.broadcast %60 : vector<8x1xf32> to vector<8x32xf32>
    %63 = vector.broadcast %2 : vector<1x32xf32> to vector<8x32xf32>
    %64 = arith.mulf %62, %63 : vector<8x32xf32>
    %cst_13 = arith.constant dense<0.000000e+00> : vector<8x32xf32>
    %65 = tpu.matmul %61, %3, %cst_13 {dimension_numbers = #tpu.dot_dimension_numbers<[1], [0], [0], [1], [0, 0, 1, 1], [], []>} : vector<8x32xf32>, vector<32x32xf32>, vector<8x32xf32> -> vector<8x32xf32>
    %66 = arith.addf %64, %65 : vector<8x32xf32>
    %67 = vector.broadcast %4 : vector<1x32xf32> to vector<8x32xf32>
    %68 = arith.addf %66, %67 : vector<8x32xf32>
    %69 = vector.extract_strided_slice %1 {offsets = [0, 7], sizes = [8, 1], strides = [1, 1]} : vector<8x8xf32> to vector<8x1xf32>
    %70 = math.tanh %68 : vector<8x32xf32>
    %c0_14 = arith.constant 0 : index
    %c0_15 = arith.constant 0 : index
    %71 = vector.load %arg4[%c0_14, %c0_15] : memref<1x128xf32, #tpu.memory_space<vmem>>, vector<1x128xf32>
    %72 = vector.broadcast %69 : vector<8x1xf32> to vector<8x128xf32>
    %73 = vector.broadcast %71 : vector<1x128xf32> to vector<8x128xf32>
    %74 = arith.mulf %72, %73 : vector<8x128xf32>
    %c0_16 = arith.constant 0 : index
    %c0_17 = arith.constant 0 : index
    %75 = vector.load %arg5[%c0_16, %c0_17] : memref<32x128xf32, #tpu.memory_space<vmem>>, vector<32x128xf32>
    %cst_18 = arith.constant dense<0.000000e+00> : vector<8x128xf32>
    %76 = tpu.matmul %70, %75, %cst_18 {dimension_numbers = #tpu.dot_dimension_numbers<[1], [0], [0], [1], [0, 0, 1, 1], [], []>} : vector<8x32xf32>, vector<32x128xf32>, vector<8x128xf32> -> vector<8x128xf32>
    %77 = arith.addf %74, %76 : vector<8x128xf32>
    %c0_19 = arith.constant 0 : index
    %c0_20 = arith.constant 0 : index
    %78 = vector.load %arg6[%c0_19, %c0_20] : memref<1x128xf32, #tpu.memory_space<vmem>>, vector<1x128xf32>
    %79 = vector.broadcast %78 : vector<1x128xf32> to vector<8x128xf32>
    %80 = arith.addf %77, %79 : vector<8x128xf32>
    %cst_21 = arith.constant dense<0xFF800000> : vector<8xf32>
    %81 = vector.multi_reduction <maximumf>, %80, %cst_21 [1] : vector<8x128xf32> to vector<8xf32>
    %82 = vector.shape_cast %81 : vector<8xf32> to vector<8x1xf32>
    %83 = vector.broadcast %82 : vector<8x1xf32> to vector<8x128xf32>
    %84 = arith.subf %80, %83 : vector<8x128xf32>
    %85 = math.exp %84 : vector<8x128xf32>
    %cst_22 = arith.constant dense<0.000000e+00> : vector<8xf32>
    %86 = vector.multi_reduction <add>, %85, %cst_22 [1] : vector<8x128xf32> to vector<8xf32>
    %87 = vector.shape_cast %86 : vector<8xf32> to vector<8x1xf32>
    %88 = vector.broadcast %87 : vector<8x1xf32> to vector<8x128xf32>
    %89 = arith.divf %85, %88 : vector<8x128xf32>
    %c0_23 = arith.constant 0 : index
    %c0_24 = arith.constant 0 : index
    %90 = vector.load %arg7[%c0_23, %c0_24] : memref<128x128xf32, #tpu.memory_space<vmem>>, vector<128x128xf32>
    %cst_25 = arith.constant dense<0.000000e+00> : vector<8x128xf32>
    %91 = tpu.matmul %89, %90, %cst_25 {dimension_numbers = #tpu.dot_dimension_numbers<[1], [0], [0], [1], [0, 0, 1, 1], [], []>} : vector<8x128xf32>, vector<128x128xf32>, vector<8x128xf32> -> vector<8x128xf32>
    %c0_26 = arith.constant 0 : index
    %c0_27 = arith.constant 0 : index
    %92 = vector.load %arg8[%c0_26, %c0_27] : memref<1x128xf32, #tpu.memory_space<vmem>>, vector<1x128xf32>
    %93 = vector.broadcast %92 : vector<1x128xf32> to vector<8x128xf32>
    %94 = arith.addf %91, %93 : vector<8x128xf32>
    %c0_28 = arith.constant 0 : index
    %c0_29 = arith.constant 0 : index
    %95 = vector.load %arg9[%c0_28, %c0_29] : memref<1x128xf32, #tpu.memory_space<vmem>>, vector<1x128xf32>
    %96 = vector.broadcast %95 : vector<1x128xf32> to vector<8x128xf32>
    %97 = arith.mulf %94, %96 : vector<8x128xf32>
    %cst_30 = arith.constant dense<0.000000e+00> : vector<8xf32>
    %98 = vector.multi_reduction <add>, %97, %cst_30 [1] : vector<8x128xf32> to vector<8xf32>
    %99 = vector.shape_cast %98 : vector<8xf32> to vector<8x1xf32>
    %c0_31 = arith.constant 0 : index
    %100 = memref.load %arg10[%c0_31] : memref<1xf32, #tpu.memory_space<smem>>
    %101 = vector.broadcast %100 : f32 to vector<8x1xf32>
    %102 = arith.addf %99, %101 : vector<8x1xf32>
    %c0_32 = arith.constant 0 : index
    %c0_33 = arith.constant 0 : index
    %103 = vector.load %arg11[%c0_32, %c0_33] : memref<8x1xf32, #tpu.memory_space<vmem>>, vector<8x1xf32>
    tpu.vector_store %arg11[%c0_32, %c0_33], %102 {strides = array<i32>} : memref<8x1xf32, #tpu.memory_space<vmem>>, vector<8x1xf32>,
    return
  }
}

</mosaic_0001>

<llo_original>
// kernel: tpu_custom_call.1
$region0: #{tpu_custom_call.1}
  #allocation0 [shape = 'u32[]', space=smem, size = 0x4, offset = 0x4, fixed_abs, tag = 'smem constant byte address 0x4 - core index']
  #allocation1 [shape = 'u32[144,128]{1,0:T(1,128)}', space=vmem, size = 0x12000, scoped, tag = 'internal scratch']
  #allocation2 [shape = 'f32[1]{0:T(128)S(6)}', space=smem, size = 0x200, scoped, tag = 'scoped memory for tpu_custom_call.1']
  %s0 = inlined_call_operand.hbm [shape: f32[8,8], index: 0, kind: input, shape index: {}]
  %s1 = inlined_call_operand.vmem [shape: f32[1,32], index: 1, kind: input, shape index: {}]
  %s2 = inlined_call_operand.hbm [shape: f32[32,32], index: 2, kind: input, shape index: {}]
  %s3 = inlined_call_operand.vmem [shape: f32[1,32], index: 3, kind: input, shape index: {}]
  %s4 = inlined_call_operand.vmem [shape: f32[1,128], index: 4, kind: input, shape index: {}]
  %s5 = inlined_call_operand.hbm [shape: f32[32,128], index: 5, kind: input, shape index: {}]
  %s6 = inlined_call_operand.vmem [shape: f32[1,128], index: 6, kind: input, shape index: {}]
  %s7 = inlined_call_operand.hbm [shape: f32[128,128], index: 7, kind: input, shape index: {}]
  %s8 = inlined_call_operand.vmem [shape: f32[1,128], index: 8, kind: input, shape index: {}]
  %s9 = inlined_call_operand.vmem [shape: f32[1,128], index: 9, kind: input, shape index: {}]
  %s10 = inlined_call_operand.<no memory space> [shape: f32[1], index: 10, kind: input, shape index: {}]
  %s11 = inlined_call_operand.vmem [shape: f32[8,1], index: 11, kind: output, shape index: {}]
  %s12 = sld [smem:[#allocation0]]
  $region70: #{tpu_custom_call.1} parent=0
    _
  %s14 = ssub.s32 1, %s12
  %s15 = scalar_select 0, %s14, %s12
  %16 = sst [smem:[#allocation2]] %s10
  $region1: #{tpu_custom_call.1} parent=0
    #allocation3 [shape = 'u8[4096]{0}', space=vmem, size = 0x1000, scoped, tag = 'input window, operand 0, single buffered']
    #allocation4 [shape = 's32[1]{0}', space=sflag, size = 0x4, scoped, tag = 'scoped memory for tpu_custom_call.1']
    #allocation5 [shape = 'u8[16384]{0}', space=vmem, size = 0x4000, scoped, tag = 'input window, operand 2, single buffered']
    #allocation6 [shape = 's32[1]{0}', space=sflag, size = 0x4, scoped, tag = 'scoped memory for tpu_custom_call.1']
    #allocation7 [shape = 'u8[16384]{0}', space=vmem, size = 0x4000, scoped, tag = 'input window, operand 5, single buffered']
    #allocation8 [shape = 'u8[65536]{0}', space=vmem, size = 0x10000, scoped, tag = 'input window, operand 7, single buffered']
    #allocation9 [shape = 's32[1]{0}', space=sflag, size = 0x4, scoped, tag = 'scoped memory for tpu_custom_call.1']
    %17 = vsyncpa [#allocation4], 0
    %18 = vsyncpa [#allocation6], 0
    %19 = vsyncpa [#allocation9], 0
    // Predicated region
    $region2: #{tpu_custom_call.1} parent=1 // pred_check
      _
    $region3: #{tpu_custom_call.1} parent=1 // pred_check_branch
      %21 = sbr.rel (0) target = $region5
    $region4: #{tpu_custom_call.1} parent=1 // pred_region
      %s23 = ssub.s32 128, 128
      %24 = vsyncadd [#allocation4], %s23
      %s26 = sshll.u32 [#allocation3], 4
      %s27 = int_to_ptr.vmem [resolvable:$true] %s26
      %29 = dma.hbm_to_vmem [thread:$0]  %s0, 128, %s27, [#allocation4]
    $region5: #{tpu_custom_call.1} parent=1 // pred_fallthru
      _
    // Predicated region
    $region6: #{tpu_custom_call.1} parent=1 // pred_check
      _
    $region7: #{tpu_custom_call.1} parent=1 // pred_check_branch
      %31 = sbr.rel (0) target = $region9
    $region8: #{tpu_custom_call.1} parent=1 // pred_region
      _
    $region9: #{tpu_custom_call.1} parent=1 // pred_fallthru
      _
    // Predicated region
    $region10: #{tpu_custom_call.1} parent=1 // pred_check
      _
    $region11: #{tpu_custom_call.1} parent=1 // pred_check_branch
      %33 = sbr.rel (0) target = $region13
    $region12: #{tpu_custom_call.1} parent=1 // pred_region
      %s35 = ssub.s32 512, 512
      %36 = vsyncadd [#allocation6], %s35
      %s37 = sshll.u32 [#allocation5], 4
      %s38 = int_to_ptr.vmem [resolvable:$true] %s37
      %43 = dma.hbm_to_vmem [thread:$0]  %s2, 512, %s38, [#allocation6], 128, 128, 8
    $region13: #{tpu_custom_call.1} parent=1 // pred_fallthru
      _
    // Predicated region
    $region14: #{tpu_custom_call.1} parent=1 // pred_check
      _
    $region15: #{tpu_custom_call.1} parent=1 // pred_check_branch
      %45 = sbr.rel (0) target = $region17
    $region16: #{tpu_custom_call.1} parent=1 // pred_region
      _
    $region17: #{tpu_custom_call.1} parent=1 // pred_fallthru
      _
    // Predicated region
    $region18: #{tpu_custom_call.1} parent=1 // pred_check
      _
    $region19: #{tpu_custom_call.1} parent=1 // pred_check_branch
      %47 = sbr.rel (0) target = $region21
    $region20: #{tpu_custom_call.1} parent=1 // pred_region
      _
    $region21: #{tpu_custom_call.1} parent=1 // pred_fallthru
      _
    // Predicated region
    $region22: #{tpu_custom_call.1} parent=1 // pred_check
      _
    $region23: #{tpu_custom_call.1} parent=1 // pred_check_branch
      %49 = sbr.rel (0) target = $region25
    $region24: #{tpu_custom_call.1} parent=1 // pred_region
      %s51 = ssub.s32 512, 512
      %52 = vsyncadd [#allocation6], %s51
      %s53 = sshll.u32 [#allocation7], 4
      %s54 = int_to_ptr.vmem [resolvable:$true] %s53
      %59 = dma.hbm_to_vmem [thread:$0]  %s5, 512, %s54, [#allocation6], 128, 128, 8
    $region25: #{tpu_custom_call.1} parent=1 // pred_fallthru
      _
    // Predicated region
    $region26: #{tpu_custom_call.1} parent=1 // pred_check
      _
    $region27: #{tpu_custom_call.1} parent=1 // pred_check_branch
      %61 = sbr.rel (0) target = $region29
    $region28: #{tpu_custom_call.1} parent=1 // pred_region
      _
    $region29: #{tpu_custom_call.1} parent=1 // pred_fallthru
      _
    // Predicated region
    $region30: #{tpu_custom_call.1} parent=1 // pred_check
      _
    $region31: #{tpu_custom_call.1} parent=1 // pred_check_branch
      %63 = sbr.rel (0) target = $region33
    $region32: #{tpu_custom_call.1} parent=1 // pred_region
      %s65 = ssub.s32 2048, 2048
      %66 = vsyncadd [#allocation9], %s65
      %s67 = sshll.u32 [#allocation8], 4
      %s68 = int_to_ptr.vmem [resolvable:$true] %s67
      %73 = dma.hbm_to_vmem [thread:$0]  %s7, 2048, %s68, [#allocation9], 128, 128, 8
    $region33: #{tpu_custom_call.1} parent=1 // pred_fallthru
      _
    // Predicated region
    $region34: #{tpu_custom_call.1} parent=1 // pred_check
      _
    $region35: #{tpu_custom_call.1} parent=1 // pred_check_branch
      %75 = sbr.rel (0) target = $region37
    $region36: #{tpu_custom_call.1} parent=1 // pred_region
      _
    $region37: #{tpu_custom_call.1} parent=1 // pred_fallthru
      _
    // Predicated region
    $region38: #{tpu_custom_call.1} parent=1 // pred_check
      _
    $region39: #{tpu_custom_call.1} parent=1 // pred_check_branch
      %77 = sbr.rel (0) target = $region41
    $region40: #{tpu_custom_call.1} parent=1 // pred_region
      _
    $region41: #{tpu_custom_call.1} parent=1 // pred_fallthru
      _
    // Predicated region
    $region42: #{tpu_custom_call.1} parent=1 // pred_check
      _
    $region43: #{tpu_custom_call.1} parent=1 // pred_check_branch
      %79 = sbr.rel (0) target = $region45
    $region44: #{tpu_custom_call.1} parent=1 // pred_region
      _
    $region45: #{tpu_custom_call.1} parent=1 // pred_fallthru
      _
    // Predicated region
    $region46: #{tpu_custom_call.1} parent=1 // pred_check
      _
    $region47: #{tpu_custom_call.1} parent=1 // pred_check_branch
      %81 = sbr.rel (0) target = $region49
    $region48: #{tpu_custom_call.1} parent=1 // pred_region
      %82 = dma.done [#allocation4], 128
    $region49: #{tpu_custom_call.1} parent=1 // pred_fallthru
      _
    // Predicated region
    $region50: #{tpu_custom_call.1} parent=1 // pred_check
      _
    $region51: #{tpu_custom_call.1} parent=1 // pred_check_branch
      %84 = sbr.rel (0) target = $region53
    $region52: #{tpu_custom_call.1} parent=1 // pred_region
      %85 = dma.done [#allocation6], 512
    $region53: #{tpu_custom_call.1} parent=1 // pred_fallthru
      _
    // Predicated region
    $region54: #{tpu_custom_call.1} parent=1 // pred_check
      _
    $region55: #{tpu_custom_call.1} parent=1 // pred_check_branch
      %87 = sbr.rel (0) target = $region57
    $region56: #{tpu_custom_call.1} parent=1 // pred_region
      %88 = dma.done [#allocation6], 512
    $region57: #{tpu_custom_call.1} parent=1 // pred_fallthru
      _
    // Predicated region
    $region58: #{tpu_custom_call.1} parent=1 // pred_check
      _
    $region59: #{tpu_custom_call.1} parent=1 // pred_check_branch
      %90 = sbr.rel (0) target = $region61
    $region60: #{tpu_custom_call.1} parent=1 // pred_region
      %91 = dma.done [#allocation9], 2048
    $region61: #{tpu_custom_call.1} parent=1 // pred_fallthru
      _
    %v92 = vld [vmem:[#allocation3] sm:$0xff]
    %v93 = vtanh.pop %v92
    %v94 = vld [vmem:[%s1] sm:$0x1]
    %v95 = vld [vmem:[#allocation5] sm:$0xff]
    %v96 = vld [vmem:[#allocation5 + $0x8] sm:$0xff]
    %v97 = vld [vmem:[#allocation5 + $0x10] sm:$0xff]
    %v98 = vld [vmem:[#allocation5 + $0x18] sm:$0xff]
    %v99 = vld [vmem:[%s3] sm:$0x1]
    %101 = vset.pattern.permute.xlu0 0
    %102 = vperm.xlu0 %101, %v93
    %v103 = vpop.permute.xlu0 %102
    %v106 = vlaneseq
    %v107 = vshrl.u32 %v106, 7
    %v108 = vsub.s32 0, %v107
    %v109 = vrot.slane %v94, %v108
    %v111 = vmul.f32 %v103, %v109
    %vm112 = vcmask 261120
    %v114 = vsel %vm112, 0.0, 0
    %116 = vmatprep.subr.mxu0 0.0
    %117 = vmatpush1.msra.mxu0 %v95
    %118 = vmatprep.subr.mxu0 0.0
    %119 = vmatpush1.msra.mxu0 %v96
    %120 = vmatprep.subr.mxu0 0.0
    %121 = vmatpush1.msra.mxu0 %v97
    %122 = vmatprep.subr.mxu0 0.0
    %123 = vmatpush1.msra.mxu0 %v98
    %124 = vmatprep.subr.mxu0 0.0
    %125 = vmatpush1.msra.mxu0 0.0
    %126 = vmatprep.subr.mxu0 0.0
    %127 = vmatpush1.msra.mxu0 0.0
    %128 = vmatprep.subr.mxu0 0.0
    %129 = vmatpush1.msra.mxu0 0.0
    %130 = vmatprep.subr.mxu0 0.0
    %131 = vmatpush1.msra.mxu0 0.0
    %132 = vmatprep.subr.mxu0 0.0
    %133 = vmatpush1.msra.mxu0 0.0
    %134 = vmatprep.subr.mxu0 0.0
    %135 = vmatpush1.msra.mxu0 0.0
    %136 = vmatprep.subr.mxu0 0.0
    %137 = vmatpush1.msra.mxu0 0.0
    %138 = vmatprep.subr.mxu0 0.0
    %139 = vmatpush1.msra.mxu0 0.0
    %140 = vmatprep.subr.mxu0 0.0
    %141 = vmatpush1.msra.mxu0 0.0
    %142 = vmatprep.subr.mxu0 0.0
    %143 = vmatpush1.msra.mxu0 0.0
    %144 = vmatprep.subr.mxu0 0.0
    %145 = vmatpush1.msra.mxu0 0.0
    %146 = vmatprep.subr.mxu0 0.0
    %147 = vmatpush1.msra.mxu0 0.0
    %148 = vmatprep.subr.mxu0 0.0
    %149 = vmatpush1.msra.mxu0 0.0
    %150 = vmatprep.subr.mxu0 0.0
    %151 = vmatpush1.msra.mxu0 0.0
    %152 = vmatprep.subr.mxu0 0.0
    %153 = vmatpush1.msra.mxu0 0.0
    %154 = vmatprep.subr.mxu0 0.0
    %155 = vmatpush1.msra.mxu0 0.0
    %156 = vmatprep.subr.mxu0 0.0
    %157 = vmatpush1.msra.mxu0 0.0
    %158 = vmatprep.subr.mxu0 0.0
    %159 = vmatpush1.msra.mxu0 0.0
    %160 = vmatprep.subr.mxu0 0.0
    %161 = vmatpush1.msra.mxu0 0.0
    %162 = vmatprep.subr.mxu0 0.0
    %163 = vmatpush1.msra.mxu0 0.0
    %164 = vmatprep.subr.mxu0 0.0
    %165 = vmatpush1.msra.mxu0 0.0
    %166 = vmatprep.subr.mxu0 0.0
    %167 = vmatpush1.msra.mxu0 0.0
    %168 = vmatprep.subr.mxu0 0.0
    %169 = vmatpush1.msra.mxu0 0.0
    %170 = vmatprep.subr.mxu0 0.0
    %171 = vmatpush1.msra.mxu0 0.0
    %172 = vmatprep.subr.mxu0 0.0
    %173 = vmatpush1.msra.mxu0 0.0
    %174 = vmatprep.subr.mxu0 0.0
    %175 = vmatpush1.msra.mxu0 0.0
    %176 = vmatprep.subr.mxu0 0.0
    %177 = vmatpush1.msra.mxu0 0.0
    %178 = vmatprep.subr.mxu0 0.0
    %179 = vmatpush1.msra.mxu0 0.0
    %180 = vmatprep.mubr.f32.mxu0 0.0
    %181 = vmatmul.mubr.f32.gmra.mrb[0].mxu0 %v114
    %v182 = vpop.f32.mrb[0].mxu0
    %v183 = vadd.f32 0.0, %v182
    %v184 = vpop.f32.mrb[0].mxu0
    %185 = vdwg.mxu0
    %v186 = vadd.f32 %v111, %v183
    %v188 = vlaneseq
    %v189 = vshrl.u32 %v188, 7
    %v190 = vsub.s32 0, %v189
    %v191 = vrot.slane %v99, %v190
    %v193 = vadd.f32 %v186, %v191
    %v194 = vtanh.pop %v193
    %195 = vset.pattern.permute.xlu0 1
    %196 = vperm.xlu0 %195, %v93
    %v197 = vpop.permute.xlu0 %196
    %v199 = vmul.f32 %v197, %v109
    %v201 = vsel %vm112, %v194, 0
    %203 = vmatprep.subr.mxu0 0.0
    %204 = vmatpush1.msra.mxu0 %v95
    %205 = vmatprep.subr.mxu0 0.0
    %206 = vmatpush1.msra.mxu0 %v96
    %207 = vmatprep.subr.mxu0 0.0
    %208 = vmatpush1.msra.mxu0 %v97
    %209 = vmatprep.subr.mxu0 0.0
    %210 = vmatpush1.msra.mxu0 %v98
    %211 = vmatprep.subr.mxu0 0.0
    %212 = vmatpush1.msra.mxu0 0.0
    %213 = vmatprep.subr.mxu0 0.0
    %214 = vmatpush1.msra.mxu0 0.0
    %215 = vmatprep.subr.mxu0 0.0
    %216 = vmatpush1.msra.mxu0 0.0
    %217 = vmatprep.subr.mxu0 0.0
    %218 = vmatpush1.msra.mxu0 0.0
    %219 = vmatprep.subr.mxu0 0.0
    %220 = vmatpush1.msra.mxu0 0.0
    %221 = vmatprep.subr.mxu0 0.0
    %222 = vmatpush1.msra.mxu0 0.0
    %223 = vmatprep.subr.mxu0 0.0
    %224 = vmatpush1.msra.mxu0 0.0
    %225 = vmatprep.subr.mxu0 0.0
    %226 = vmatpush1.msra.mxu0 0.0
    %227 = vmatprep.subr.mxu0 0.0
    %228 = vmatpush1.msra.mxu0 0.0
    %229 = vmatprep.subr.mxu0 0.0
    %230 = vmatpush1.msra.mxu0 0.0
    %231 = vmatprep.subr.mxu0 0.0
    %232 = vmatpush1.msra.mxu0 0.0
    %233 = vmatprep.subr.mxu0 0.0
    %234 = vmatpush1.msra.mxu0 0.0
    %235 = vmatprep.subr.mxu0 0.0
    %236 = vmatpush1.msra.mxu0 0.0
    %237 = vmatprep.subr.mxu0 0.0
    %238 = vmatpush1.msra.mxu0 0.0
    %239 = vmatprep.subr.mxu0 0.0
    %240 = vmatpush1.msra.mxu0 0.0
    %241 = vmatprep.subr.mxu0 0.0
    %242 = vmatpush1.msra.mxu0 0.0
    %243 = vmatprep.subr.mxu0 0.0
    %244 = vmatpush1.msra.mxu0 0.0
    %245 = vmatprep.subr.mxu0 0.0
    %246 = vmatpush1.msra.mxu0 0.0
    %247 = vmatprep.subr.mxu0 0.0
    %248 = vmatpush1.msra.mxu0 0.0
    %249 = vmatprep.subr.mxu0 0.0
    %250 = vmatpush1.msra.mxu0 0.0
    %251 = vmatprep.subr.mxu0 0.0
    %252 = vmatpush1.msra.mxu0 0.0
    %253 = vmatprep.subr.mxu0 0.0
    %254 = vmatpush1.msra.mxu0 0.0
    %255 = vmatprep.subr.mxu0 0.0
    %256 = vmatpush1.msra.mxu0 0.0
    %257 = vmatprep.subr.mxu0 0.0
    %258 = vmatpush1.msra.mxu0 0.0
    %259 = vmatprep.subr.mxu0 0.0
    %260 = vmatpush1.msra.mxu0 0.0
    %261 = vmatprep.subr.mxu0 0.0
    %262 = vmatpush1.msra.mxu0 0.0
    %263 = vmatprep.subr.mxu0 0.0
    %264 = vmatpush1.msra.mxu0 0.0
    %265 = vmatprep.subr.mxu0 0.0
    %266 = vmatpush1.msra.mxu0 0.0
    %267 = vmatprep.mubr.f32.mxu0 0.0
    %268 = vmatmul.mubr.f32.gmra.mrb[0].mxu0 %v201
    %v269 = vpop.f32.mrb[0].mxu0
    %v270 = vadd.f32 0.0, %v269
    %v271 = vpop.f32.mrb[0].mxu0
    %272 = vdwg.mxu0
    %v273 = vadd.f32 %v199, %v270
    %v274 = vadd.f32 %v273, %v191
    %v275 = vtanh.pop %v274
    %276 = vset.pattern.permute.xlu0 2
    %277 = vperm.xlu0 %276, %v93
    %v278 = vpop.permute.xlu0 %277
    %v280 = vmul.f32 %v278, %v109
    %v282 = vsel %vm112, %v275, 0
    %284 = vmatprep.subr.mxu0 0.0
    %285 = vmatpush1.msra.mxu0 %v95
    %286 = vmatprep.subr.mxu0 0.0
    %287 = vmatpush1.msra.mxu0 %v96
    %288 = vmatprep.subr.mxu0 0.0
    %289 = vmatpush1.msra.mxu0 %v97
    %290 = vmatprep.subr.mxu0 0.0
    %291 = vmatpush1.msra.mxu0 %v98
    %292 = vmatprep.subr.mxu0 0.0
    %293 = vmatpush1.msra.mxu0 0.0
    %294 = vmatprep.subr.mxu0 0.0
    %295 = vmatpush1.msra.mxu0 0.0
    %296 = vmatprep.subr.mxu0 0.0
    %297 = vmatpush1.msra.mxu0 0.0
    %298 = vmatprep.subr.mxu0 0.0
    %299 = vmatpush1.msra.mxu0 0.0
    %300 = vmatprep.subr.mxu0 0.0
    %301 = vmatpush1.msra.mxu0 0.0
    %302 = vmatprep.subr.mxu0 0.0
    %303 = vmatpush1.msra.mxu0 0.0
    %304 = vmatprep.subr.mxu0 0.0
    %305 = vmatpush1.msra.mxu0 0.0
    %306 = vmatprep.subr.mxu0 0.0
    %307 = vmatpush1.msra.mxu0 0.0
    %308 = vmatprep.subr.mxu0 0.0
    %309 = vmatpush1.msra.mxu0 0.0
    %310 = vmatprep.subr.mxu0 0.0
    %311 = vmatpush1.msra.mxu0 0.0
    %312 = vmatprep.subr.mxu0 0.0
    %313 = vmatpush1.msra.mxu0 0.0
    %314 = vmatprep.subr.mxu0 0.0
    %315 = vmatpush1.msra.mxu0 0.0
    %316 = vmatprep.subr.mxu0 0.0
    %317 = vmatpush1.msra.mxu0 0.0
    %318 = vmatprep.subr.mxu0 0.0
    %319 = vmatpush1.msra.mxu0 0.0
    %320 = vmatprep.subr.mxu0 0.0
    %321 = vmatpush1.msra.mxu0 0.0
    %322 = vmatprep.subr.mxu0 0.0
    %323 = vmatpush1.msra.mxu0 0.0
    %324 = vmatprep.subr.mxu0 0.0
    %325 = vmatpush1.msra.mxu0 0.0
    %326 = vmatprep.subr.mxu0 0.0
    %327 = vmatpush1.msra.mxu0 0.0
    %328 = vmatprep.subr.mxu0 0.0
    %329 = vmatpush1.msra.mxu0 0.0
    %330 = vmatprep.subr.mxu0 0.0
    %331 = vmatpush1.msra.mxu0 0.0
    %332 = vmatprep.subr.mxu0 0.0
    %333 = vmatpush1.msra.mxu0 0.0
    %334 = vmatprep.subr.mxu0 0.0
    %335 = vmatpush1.msra.mxu0 0.0
    %336 = vmatprep.subr.mxu0 0.0
    %337 = vmatpush1.msra.mxu0 0.0
    %338 = vmatprep.subr.mxu0 0.0
    %339 = vmatpush1.msra.mxu0 0.0
    %340 = vmatprep.subr.mxu0 0.0
    %341 = vmatpush1.msra.mxu0 0.0
    %342 = vmatprep.subr.mxu0 0.0
    %343 = vmatpush1.msra.mxu0 0.0
    %344 = vmatprep.subr.mxu0 0.0
    %345 = vmatpush1.msra.mxu0 0.0
    %346 = vmatprep.subr.mxu0 0.0
    %347 = vmatpush1.msra.mxu0 0.0
    %348 = vmatprep.mubr.f32.mxu0 0.0
    %349 = vmatmul.mubr.f32.gmra.mrb[0].mxu0 %v282
    %v350 = vpop.f32.mrb[0].mxu0
    %v351 = vadd.f32 0.0, %v350
    %v352 = vpop.f32.mrb[0].mxu0
    %353 = vdwg.mxu0
    %v354 = vadd.f32 %v280, %v351
    %v355 = vadd.f32 %v354, %v191
    %v356 = vtanh.pop %v355
    %357 = vset.pattern.permute.xlu0 3
    %358 = vperm.xlu0 %357, %v93
    %v359 = vpop.permute.xlu0 %358
    %v361 = vmul.f32 %v359, %v109
    %v363 = vsel %vm112, %v356, 0
    %365 = vmatprep.subr.mxu0 0.0
    %366 = vmatpush1.msra.mxu0 %v95
    %367 = vmatprep.subr.mxu0 0.0
    %368 = vmatpush1.msra.mxu0 %v96
    %369 = vmatprep.subr.mxu0 0.0
    %370 = vmatpush1.msra.mxu0 %v97
    %371 = vmatprep.subr.mxu0 0.0
    %372 = vmatpush1.msra.mxu0 %v98
    %373 = vmatprep.subr.mxu0 0.0
    %374 = vmatpush1.msra.mxu0 0.0
    %375 = vmatprep.subr.mxu0 0.0
    %376 = vmatpush1.msra.mxu0 0.0
    %377 = vmatprep.subr.mxu0 0.0
    %378 = vmatpush1.msra.mxu0 0.0
    %379 = vmatprep.subr.mxu0 0.0
    %380 = vmatpush1.msra.mxu0 0.0
    %381 = vmatprep.subr.mxu0 0.0
    %382 = vmatpush1.msra.mxu0 0.0
    %383 = vmatprep.subr.mxu0 0.0
    %384 = vmatpush1.msra.mxu0 0.0
    %385 = vmatprep.subr.mxu0 0.0
    %386 = vmatpush1.msra.mxu0 0.0
    %387 = vmatprep.subr.mxu0 0.0
    %388 = vmatpush1.msra.mxu0 0.0
    %389 = vmatprep.subr.mxu0 0.0
    %390 = vmatpush1.msra.mxu0 0.0
    %391 = vmatprep.subr.mxu0 0.0
    %392 = vmatpush1.msra.mxu0 0.0
    %393 = vmatprep.subr.mxu0 0.0
    %394 = vmatpush1.msra.mxu0 0.0
    %395 = vmatprep.subr.mxu0 0.0
    %396 = vmatpush1.msra.mxu0 0.0
    %397 = vmatprep.subr.mxu0 0.0
    %398 = vmatpush1.msra.mxu0 0.0
    %399 = vmatprep.subr.mxu0 0.0
    %400 = vmatpush1.msra.mxu0 0.0
    %401 = vmatprep.subr.mxu0 0.0
    %402 = vmatpush1.msra.mxu0 0.0
    %403 = vmatprep.subr.mxu0 0.0
    %404 = vmatpush1.msra.mxu0 0.0
    %405 = vmatprep.subr.mxu0 0.0
    %406 = vmatpush1.msra.mxu0 0.0
    %407 = vmatprep.subr.mxu0 0.0
    %408 = vmatpush1.msra.mxu0 0.0
    %409 = vmatprep.subr.mxu0 0.0
    %410 = vmatpush1.msra.mxu0 0.0
    %411 = vmatprep.subr.mxu0 0.0
    %412 = vmatpush1.msra.mxu0 0.0
    %413 = vmatprep.subr.mxu0 0.0
    %414 = vmatpush1.msra.mxu0 0.0
    %415 = vmatprep.subr.mxu0 0.0
    %416 = vmatpush1.msra.mxu0 0.0
    %417 = vmatprep.subr.mxu0 0.0
    %418 = vmatpush1.msra.mxu0 0.0
    %419 = vmatprep.subr.mxu0 0.0
    %420 = vmatpush1.msra.mxu0 0.0
    %421 = vmatprep.subr.mxu0 0.0
    %422 = vmatpush1.msra.mxu0 0.0
    %423 = vmatprep.subr.mxu0 0.0
    %424 = vmatpush1.msra.mxu0 0.0
    %425 = vmatprep.subr.mxu0 0.0
    %426 = vmatpush1.msra.mxu0 0.0
    %427 = vmatprep.subr.mxu0 0.0
    %428 = vmatpush1.msra.mxu0 0.0
    %429 = vmatprep.mubr.f32.mxu0 0.0
    %430 = vmatmul.mubr.f32.gmra.mrb[0].mxu0 %v363
    %v431 = vpop.f32.mrb[0].mxu0
    %v432 = vadd.f32 0.0, %v431
    %v433 = vpop.f32.mrb[0].mxu0
    %434 = vdwg.mxu0
    %v435 = vadd.f32 %v361, %v432
    %v436 = vadd.f32 %v435, %v191
    %v437 = vtanh.pop %v436
    %438 = vset.pattern.permute.xlu0 4
    %439 = vperm.xlu0 %438, %v93
    %v440 = vpop.permute.xlu0 %439
    %v442 = vmul.f32 %v440, %v109
    %v444 = vsel %vm112, %v437, 0
    %446 = vmatprep.subr.mxu0 0.0
    %447 = vmatpush1.msra.mxu0 %v95
    %448 = vmatprep.subr.mxu0 0.0
    %449 = vmatpush1.msra.mxu0 %v96
    %450 = vmatprep.subr.mxu0 0.0
    %451 = vmatpush1.msra.mxu0 %v97
    %452 = vmatprep.subr.mxu0 0.0
    %453 = vmatpush1.msra.mxu0 %v98
    %454 = vmatprep.subr.mxu0 0.0
    %455 = vmatpush1.msra.mxu0 0.0
    %456 = vmatprep.subr.mxu0 0.0
    %457 = vmatpush1.msra.mxu0 0.0
    %458 = vmatprep.subr.mxu0 0.0
    %459 = vmatpush1.msra.mxu0 0.0
    %460 = vmatprep.subr.mxu0 0.0
    %461 = vmatpush1.msra.mxu0 0.0
    %462 = vmatprep.subr.mxu0 0.0
    %463 = vmatpush1.msra.mxu0 0.0
    %464 = vmatprep.subr.mxu0 0.0
    %465 = vmatpush1.msra.mxu0 0.0
    %466 = vmatprep.subr.mxu0 0.0
    %467 = vmatpush1.msra.mxu0 0.0
    %468 = vmatprep.subr.mxu0 0.0
    %469 = vmatpush1.msra.mxu0 0.0
    %470 = vmatprep.subr.mxu0 0.0
    %471 = vmatpush1.msra.mxu0 0.0
    %472 = vmatprep.subr.mxu0 0.0
    %473 = vmatpush1.msra.mxu0 0.0
    %474 = vmatprep.subr.mxu0 0.0
    %475 = vmatpush1.msra.mxu0 0.0
    %476 = vmatprep.subr.mxu0 0.0
    %477 = vmatpush1.msra.mxu0 0.0
    %478 = vmatprep.subr.mxu0 0.0
    %479 = vmatpush1.msra.mxu0 0.0
    %480 = vmatprep.subr.mxu0 0.0
    %481 = vmatpush1.msra.mxu0 0.0
    %482 = vmatprep.subr.mxu0 0.0
    %483 = vmatpush1.msra.mxu0 0.0
    %484 = vmatprep.subr.mxu0 0.0
    %485 = vmatpush1.msra.mxu0 0.0
    %486 = vmatprep.subr.mxu0 0.0
    %487 = vmatpush1.msra.mxu0 0.0
    %488 = vmatprep.subr.mxu0 0.0
    %489 = vmatpush1.msra.mxu0 0.0
    %490 = vmatprep.subr.mxu0 0.0
    %491 = vmatpush1.msra.mxu0 0.0
    %492 = vmatprep.subr.mxu0 0.0
    %493 = vmatpush1.msra.mxu0 0.0
    %494 = vmatprep.subr.mxu0 0.0
    %495 = vmatpush1.msra.mxu0 0.0
    %496 = vmatprep.subr.mxu0 0.0
    %497 = vmatpush1.msra.mxu0 0.0
    %498 = vmatprep.subr.mxu0 0.0
    %499 = vmatpush1.msra.mxu0 0.0
    %500 = vmatprep.subr.mxu0 0.0
    %501 = vmatpush1.msra.mxu0 0.0
    %502 = vmatprep.subr.mxu0 0.0
    %503 = vmatpush1.msra.mxu0 0.0
    %504 = vmatprep.subr.mxu0 0.0
    %505 = vmatpush1.msra.mxu0 0.0
    %506 = vmatprep.subr.mxu0 0.0
    %507 = vmatpush1.msra.mxu0 0.0
    %508 = vmatprep.subr.mxu0 0.0
    %509 = vmatpush1.msra.mxu0 0.0
    %510 = vmatprep.mubr.f32.mxu0 0.0
    %511 = vmatmul.mubr.f32.gmra.mrb[0].mxu0 %v444
    %v512 = vpop.f32.mrb[0].mxu0
    %v513 = vadd.f32 0.0, %v512
    %v514 = vpop.f32.mrb[0].mxu0
    %515 = vdwg.mxu0
    %v516 = vadd.f32 %v442, %v513
    %v517 = vadd.f32 %v516, %v191
    %v518 = vtanh.pop %v517
    %519 = vset.pattern.permute.xlu0 5
    %520 = vperm.xlu0 %519, %v93
    %v521 = vpop.permute.xlu0 %520
    %v523 = vmul.f32 %v521, %v109
    %v525 = vsel %vm112, %v518, 0
    %527 = vmatprep.subr.mxu0 0.0
    %528 = vmatpush1.msra.mxu0 %v95
    %529 = vmatprep.subr.mxu0 0.0
    %530 = vmatpush1.msra.mxu0 %v96
    %531 = vmatprep.subr.mxu0 0.0
    %532 = vmatpush1.msra.mxu0 %v97
    %533 = vmatprep.subr.mxu0 0.0
    %534 = vmatpush1.msra.mxu0 %v98
    %535 = vmatprep.subr.mxu0 0.0
    %536 = vmatpush1.msra.mxu0 0.0
    %537 = vmatprep.subr.mxu0 0.0
    %538 = vmatpush1.msra.mxu0 0.0
    %539 = vmatprep.subr.mxu0 0.0
    %540 = vmatpush1.msra.mxu0 0.0
    %541 = vmatprep.subr.mxu0 0.0
    %542 = vmatpush1.msra.mxu0 0.0
    %543 = vmatprep.subr.mxu0 0.0
    %544 = vmatpush1.msra.mxu0 0.0
    %545 = vmatprep.subr.mxu0 0.0
    %546 = vmatpush1.msra.mxu0 0.0
    %547 = vmatprep.subr.mxu0 0.0
    %548 = vmatpush1.msra.mxu0 0.0
    %549 = vmatprep.subr.mxu0 0.0
    %550 = vmatpush1.msra.mxu0 0.0
    %551 = vmatprep.subr.mxu0 0.0
    %552 = vmatpush1.msra.mxu0 0.0
    %553 = vmatprep.subr.mxu0 0.0
    %554 = vmatpush1.msra.mxu0 0.0
    %555 = vmatprep.subr.mxu0 0.0
    %556 = vmatpush1.msra.mxu0 0.0
    %557 = vmatprep.subr.mxu0 0.0
    %558 = vmatpush1.msra.mxu0 0.0
    %559 = vmatprep.subr.mxu0 0.0
    %560 = vmatpush1.msra.mxu0 0.0
    %561 = vmatprep.subr.mxu0 0.0
    %562 = vmatpush1.msra.mxu0 0.0
    %563 = vmatprep.subr.mxu0 0.0
    %564 = vmatpush1.msra.mxu0 0.0
    %565 = vmatprep.subr.mxu0 0.0
    %566 = vmatpush1.msra.mxu0 0.0
    %567 = vmatprep.subr.mxu0 0.0
    %568 = vmatpush1.msra.mxu0 0.0
    %569 = vmatprep.subr.mxu0 0.0
    %570 = vmatpush1.msra.mxu0 0.0
    %571 = vmatprep.subr.mxu0 0.0
    %572 = vmatpush1.msra.mxu0 0.0
    %573 = vmatprep.subr.mxu0 0.0
    %574 = vmatpush1.msra.mxu0 0.0
    %575 = vmatprep.subr.mxu0 0.0
    %576 = vmatpush1.msra.mxu0 0.0
    %577 = vmatprep.subr.mxu0 0.0
    %578 = vmatpush1.msra.mxu0 0.0
    %579 = vmatprep.subr.mxu0 0.0
    %580 = vmatpush1.msra.mxu0 0.0
    %581 = vmatprep.subr.mxu0 0.0
    %582 = vmatpush1.msra.mxu0 0.0
    %583 = vmatprep.subr.mxu0 0.0
    %584 = vmatpush1.msra.mxu0 0.0
    %585 = vmatprep.subr.mxu0 0.0
    %586 = vmatpush1.msra.mxu0 0.0
    %587 = vmatprep.subr.mxu0 0.0
    %588 = vmatpush1.msra.mxu0 0.0
    %589 = vmatprep.subr.mxu0 0.0
    %590 = vmatpush1.msra.mxu0 0.0
    %591 = vmatprep.mubr.f32.mxu0 0.0
    %592 = vmatmul.mubr.f32.gmra.mrb[0].mxu0 %v525
    %v593 = vpop.f32.mrb[0].mxu0
    %v594 = vadd.f32 0.0, %v593
    %v595 = vpop.f32.mrb[0].mxu0
    %596 = vdwg.mxu0
    %v597 = vadd.f32 %v523, %v594
    %v598 = vadd.f32 %v597, %v191
    %v599 = vtanh.pop %v598
    %600 = vset.pattern.permute.xlu0 6
    %601 = vperm.xlu0 %600, %v93
    %v602 = vpop.permute.xlu0 %601
    %v604 = vmul.f32 %v602, %v109
    %v606 = vsel %vm112, %v599, 0
    %608 = vmatprep.subr.mxu0 0.0
    %609 = vmatpush1.msra.mxu0 %v95
    %610 = vmatprep.subr.mxu0 0.0
    %611 = vmatpush1.msra.mxu0 %v96
    %612 = vmatprep.subr.mxu0 0.0
    %613 = vmatpush1.msra.mxu0 %v97
    %614 = vmatprep.subr.mxu0 0.0
    %615 = vmatpush1.msra.mxu0 %v98
    %616 = vmatprep.subr.mxu0 0.0
    %617 = vmatpush1.msra.mxu0 0.0
    %618 = vmatprep.subr.mxu0 0.0
    %619 = vmatpush1.msra.mxu0 0.0
    %620 = vmatprep.subr.mxu0 0.0
    %621 = vmatpush1.msra.mxu0 0.0
    %622 = vmatprep.subr.mxu0 0.0
    %623 = vmatpush1.msra.mxu0 0.0
    %624 = vmatprep.subr.mxu0 0.0
    %625 = vmatpush1.msra.mxu0 0.0
    %626 = vmatprep.subr.mxu0 0.0
    %627 = vmatpush1.msra.mxu0 0.0
    %628 = vmatprep.subr.mxu0 0.0
    %629 = vmatpush1.msra.mxu0 0.0
    %630 = vmatprep.subr.mxu0 0.0
    %631 = vmatpush1.msra.mxu0 0.0
    %632 = vmatprep.subr.mxu0 0.0
    %633 = vmatpush1.msra.mxu0 0.0
    %634 = vmatprep.subr.mxu0 0.0
    %635 = vmatpush1.msra.mxu0 0.0
    %636 = vmatprep.subr.mxu0 0.0
    %637 = vmatpush1.msra.mxu0 0.0
    %638 = vmatprep.subr.mxu0 0.0
    %639 = vmatpush1.msra.mxu0 0.0
    %640 = vmatprep.subr.mxu0 0.0
    %641 = vmatpush1.msra.mxu0 0.0
    %642 = vmatprep.subr.mxu0 0.0
    %643 = vmatpush1.msra.mxu0 0.0
    %644 = vmatprep.subr.mxu0 0.0
    %645 = vmatpush1.msra.mxu0 0.0
    %646 = vmatprep.subr.mxu0 0.0
    %647 = vmatpush1.msra.mxu0 0.0
    %648 = vmatprep.subr.mxu0 0.0
    %649 = vmatpush1.msra.mxu0 0.0
    %650 = vmatprep.subr.mxu0 0.0
    %651 = vmatpush1.msra.mxu0 0.0
    %652 = vmatprep.subr.mxu0 0.0
    %653 = vmatpush1.msra.mxu0 0.0
    %654 = vmatprep.subr.mxu0 0.0
    %655 = vmatpush1.msra.mxu0 0.0
    %656 = vmatprep.subr.mxu0 0.0
    %657 = vmatpush1.msra.mxu0 0.0
    %658 = vmatprep.subr.mxu0 0.0
    %659 = vmatpush1.msra.mxu0 0.0
    %660 = vmatprep.subr.mxu0 0.0
    %661 = vmatpush1.msra.mxu0 0.0
    %662 = vmatprep.subr.mxu0 0.0
    %663 = vmatpush1.msra.mxu0 0.0
    %664 = vmatprep.subr.mxu0 0.0
    %665 = vmatpush1.msra.mxu0 0.0
    %666 = vmatprep.subr.mxu0 0.0
    %667 = vmatpush1.msra.mxu0 0.0
    %668 = vmatprep.subr.mxu0 0.0
    %669 = vmatpush1.msra.mxu0 0.0
    %670 = vmatprep.subr.mxu0 0.0
    %671 = vmatpush1.msra.mxu0 0.0
    %672 = vmatprep.mubr.f32.mxu0 0.0
    %673 = vmatmul.mubr.f32.gmra.mrb[0].mxu0 %v606
    %v674 = vpop.f32.mrb[0].mxu0
    %v675 = vadd.f32 0.0, %v674
    %v676 = vpop.f32.mrb[0].mxu0
    %677 = vdwg.mxu0
    %v678 = vadd.f32 %v604, %v675
    %v679 = vadd.f32 %v678, %v191
    %v680 = vtanh.pop %v679
    %v681 = vld [vmem:[%s4] sm:$0x1]
    %682 = vset.pattern.permute.xlu0 7
    %683 = vperm.xlu0 %682, %v93
    %v684 = vpop.permute.xlu0 %683
    %v687 = vlaneseq
    %v688 = vshrl.u32 %v687, 7
    %v689 = vsub.s32 0, %v688
    %v690 = vrot.slane %v681, %v689
    %v692 = vmul.f32 %v684, %v690
    %v693 = vld [vmem:[#allocation7] sm:$0xff]
    %v694 = vld [vmem:[#allocation7 + $0x8] sm:$0xff]
    %v695 = vld [vmem:[#allocation7 + $0x10] sm:$0xff]
    %v696 = vld [vmem:[#allocation7 + $0x18] sm:$0xff]
    %v698 = vsel %vm112, %v680, 0
    %700 = vmatprep.subr.mxu0 0.0
    %701 = vmatpush1.msra.mxu0 %v693
    %702 = vmatprep.subr.mxu0 0.0
    %703 = vmatpush1.msra.mxu0 %v694
    %704 = vmatprep.subr.mxu0 0.0
    %705 = vmatpush1.msra.mxu0 %v695
    %706 = vmatprep.subr.mxu0 0.0
    %707 = vmatpush1.msra.mxu0 %v696
    %708 = vmatprep.subr.mxu0 0.0
    %709 = vmatpush1.msra.mxu0 0.0
    %710 = vmatprep.subr.mxu0 0.0
    %711 = vmatpush1.msra.mxu0 0.0
    %712 = vmatprep.subr.mxu0 0.0
    %713 = vmatpush1.msra.mxu0 0.0
    %714 = vmatprep.subr.mxu0 0.0
    %715 = vmatpush1.msra.mxu0 0.0
    %716 = vmatprep.subr.mxu0 0.0
    %717 = vmatpush1.msra.mxu0 0.0
    %718 = vmatprep.subr.mxu0 0.0
    %719 = vmatpush1.msra.mxu0 0.0
    %720 = vmatprep.subr.mxu0 0.0
    %721 = vmatpush1.msra.mxu0 0.0
    %722 = vmatprep.subr.mxu0 0.0
    %723 = vmatpush1.msra.mxu0 0.0
    %724 = vmatprep.subr.mxu0 0.0
    %725 = vmatpush1.msra.mxu0 0.0
    %726 = vmatprep.subr.mxu0 0.0
    %727 = vmatpush1.msra.mxu0 0.0
    %728 = vmatprep.subr.mxu0 0.0
    %729 = vmatpush1.msra.mxu0 0.0
    %730 = vmatprep.subr.mxu0 0.0
    %731 = vmatpush1.msra.mxu0 0.0
    %732 = vmatprep.subr.mxu0 0.0
    %733 = vmatpush1.msra.mxu0 0.0
    %734 = vmatprep.subr.mxu0 0.0
    %735 = vmatpush1.msra.mxu0 0.0
    %736 = vmatprep.subr.mxu0 0.0
    %737 = vmatpush1.msra.mxu0 0.0
    %738 = vmatprep.subr.mxu0 0.0
    %739 = vmatpush1.msra.mxu0 0.0
    %740 = vmatprep.subr.mxu0 0.0
    %741 = vmatpush1.msra.mxu0 0.0
    %742 = vmatprep.subr.mxu0 0.0
    %743 = vmatpush1.msra.mxu0 0.0
    %744 = vmatprep.subr.mxu0 0.0
    %745 = vmatpush1.msra.mxu0 0.0
    %746 = vmatprep.subr.mxu0 0.0
    %747 = vmatpush1.msra.mxu0 0.0
    %748 = vmatprep.subr.mxu0 0.0
    %749 = vmatpush1.msra.mxu0 0.0
    %750 = vmatprep.subr.mxu0 0.0
    %751 = vmatpush1.msra.mxu0 0.0
    %752 = vmatprep.subr.mxu0 0.0
    %753 = vmatpush1.msra.mxu0 0.0
    %754 = vmatprep.subr.mxu0 0.0
    %755 = vmatpush1.msra.mxu0 0.0
    %756 = vmatprep.subr.mxu0 0.0
    %757 = vmatpush1.msra.mxu0 0.0
    %758 = vmatprep.subr.mxu0 0.0
    %759 = vmatpush1.msra.mxu0 0.0
    %760 = vmatprep.subr.mxu0 0.0
    %761 = vmatpush1.msra.mxu0 0.0
    %762 = vmatprep.subr.mxu0 0.0
    %763 = vmatpush1.msra.mxu0 0.0
    %764 = vmatprep.mubr.f32.mxu0 0.0
    %765 = vmatmul.mubr.f32.gmra.mrb[0].mxu0 %v698
    %v766 = vpop.f32.mrb[0].mxu0
    %v767 = vadd.f32 0.0, %v766
    %v768 = vpop.f32.mrb[0].mxu0
    %769 = vdwg.mxu0
    %v770 = vadd.f32 %v692, %v767
    %v771 = vld [vmem:[%s6] sm:$0x1]
    %v773 = vlaneseq
    %v774 = vshrl.u32 %v773, 7
    %v775 = vsub.s32 0, %v774
    %v776 = vrot.slane %v771, %v775
    %v778 = vadd.f32 %v770, %v776
    %779 = vmax.xlane.f32.xlu0 %v778
    %v780 = vpop.xlane.xlu0 %779
    %v781 = vsub.f32 %v778, %v780
    %v782 = vmul.f32 %v781, 1.442695
    %v783 = vpow.pop %v782
    %784 = vadd.xlane.f32.xlu0 %v783
    %v785 = vpop.xlane.xlu0 %784
    %v786 = vrcp.pop %v785
    %v787 = vmul.f32 %v783, %v786
    %v788 = vld [vmem:[#allocation8] sm:$0xff]
    %v789 = vld [vmem:[#allocation8 + $0x8] sm:$0xff]
    %v790 = vld [vmem:[#allocation8 + $0x10] sm:$0xff]
    %v791 = vld [vmem:[#allocation8 + $0x18] sm:$0xff]
    %v792 = vld [vmem:[#allocation8 + $0x20] sm:$0xff]
    %v793 = vld [vmem:[#allocation8 + $0x28] sm:$0xff]
    %v794 = vld [vmem:[#allocation8 + $0x30] sm:$0xff]
    %v795 = vld [vmem:[#allocation8 + $0x38] sm:$0xff]
    %v796 = vld [vmem:[#allocation8 + $0x40] sm:$0xff]
    %v797 = vld [vmem:[#allocation8 + $0x48] sm:$0xff]
    %v798 = vld [vmem:[#allocation8 + $0x50] sm:$0xff]
    %v799 = vld [vmem:[#allocation8 + $0x58] sm:$0xff]
    %v800 = vld [vmem:[#allocation8 + $0x60] sm:$0xff]
    %v801 = vld [vmem:[#allocation8 + $0x68] sm:$0xff]
    %v802 = vld [vmem:[#allocation8 + $0x70] sm:$0xff]
    %v803 = vld [vmem:[#allocation8 + $0x78] sm:$0xff]
    %v804 = vld [vmem:[%s8] sm:$0x1]
    %v806 = vlaneseq
    %v807 = vshrl.u32 %v806, 7
    %v808 = vsub.s32 0, %v807
    %v809 = vrot.slane %v804, %v808
    %811 = vmatprep.subr.mxu0 0.0
    %812 = vmatpush1.msra.mxu0 %v788
    %813 = vmatprep.subr.mxu0 0.0
    %814 = vmatpush1.msra.mxu0 %v789
    %815 = vmatprep.subr.mxu0 0.0
    %816 = vmatpush1.msra.mxu0 %v790
    %817 = vmatprep.subr.mxu0 0.0
    %818 = vmatpush1.msra.mxu0 %v791
    %819 = vmatprep.subr.mxu0 0.0
    %820 = vmatpush1.msra.mxu0 %v792
    %821 = vmatprep.subr.mxu0 0.0
    %822 = vmatpush1.msra.mxu0 %v793
    %823 = vmatprep.subr.mxu0 0.0
    %824 = vmatpush1.msra.mxu0 %v794
    %825 = vmatprep.subr.mxu0 0.0
    %826 = vmatpush1.msra.mxu0 %v795
    %827 = vmatprep.subr.mxu0 0.0
    %828 = vmatpush1.msra.mxu0 %v796
    %829 = vmatprep.subr.mxu0 0.0
    %830 = vmatpush1.msra.mxu0 %v797
    %831 = vmatprep.subr.mxu0 0.0
    %832 = vmatpush1.msra.mxu0 %v798
    %833 = vmatprep.subr.mxu0 0.0
    %834 = vmatpush1.msra.mxu0 %v799
    %835 = vmatprep.subr.mxu0 0.0
    %836 = vmatpush1.msra.mxu0 %v800
    %837 = vmatprep.subr.mxu0 0.0
    %838 = vmatpush1.msra.mxu0 %v801
    %839 = vmatprep.subr.mxu0 0.0
    %840 = vmatpush1.msra.mxu0 %v802
    %841 = vmatprep.subr.mxu0 0.0
    %842 = vmatpush1.msra.mxu0 %v803
    %843 = vmatprep.subr.mxu0 0.0
    %844 = vmatpush1.msra.mxu0 0.0
    %845 = vmatprep.subr.mxu0 0.0
    %846 = vmatpush1.msra.mxu0 0.0
    %847 = vmatprep.subr.mxu0 0.0
    %848 = vmatpush1.msra.mxu0 0.0
    %849 = vmatprep.subr.mxu0 0.0
    %850 = vmatpush1.msra.mxu0 0.0
    %851 = vmatprep.subr.mxu0 0.0
    %852 = vmatpush1.msra.mxu0 0.0
    %853 = vmatprep.subr.mxu0 0.0
    %854 = vmatpush1.msra.mxu0 0.0
    %855 = vmatprep.subr.mxu0 0.0
    %856 = vmatpush1.msra.mxu0 0.0
    %857 = vmatprep.subr.mxu0 0.0
    %858 = vmatpush1.msra.mxu0 0.0
    %859 = vmatprep.subr.mxu0 0.0
    %860 = vmatpush1.msra.mxu0 0.0
    %861 = vmatprep.subr.mxu0 0.0
    %862 = vmatpush1.msra.mxu0 0.0
    %863 = vmatprep.subr.mxu0 0.0
    %864 = vmatpush1.msra.mxu0 0.0
    %865 = vmatprep.subr.mxu0 0.0
    %866 = vmatpush1.msra.mxu0 0.0
    %867 = vmatprep.subr.mxu0 0.0
    %868 = vmatpush1.msra.mxu0 0.0
    %869 = vmatprep.subr.mxu0 0.0
    %870 = vmatpush1.msra.mxu0 0.0
    %871 = vmatprep.subr.mxu0 0.0
    %872 = vmatpush1.msra.mxu0 0.0
    %873 = vmatprep.subr.mxu0 0.0
    %874 = vmatpush1.msra.mxu0 0.0
    %875 = vmatprep.mubr.f32.mxu0 0.0
    %876 = vmatmul.mubr.f32.gmra.mrb[0].mxu0 %v787
    %v877 = vpop.f32.mrb[0].mxu0
    %v878 = vadd.f32 %v809, %v877
    %v879 = vpop.f32.mrb[0].mxu0
    %880 = vdwg.mxu0
    %v881 = vld [vmem:[%s9] sm:$0x1]
    %v883 = vlaneseq
    %v884 = vshrl.u32 %v883, 7
    %v885 = vsub.s32 0, %v884
    %v886 = vrot.slane %v881, %v885
    %v888 = vmul.f32 %v878, %v886
    %889 = vadd.xlane.f32.xlu0 %v888
    %v890 = vpop.xlane.xlu0 %889
    %s891 = sld [smem:[#allocation2]]
    %v892 = vstv %s891
    %v893 = vadd.f32 %v890, %v892
    %vm894 = vcmask 7168
    %895 = vst.msk [vmem:[%s11] sm:$0xff] %vm894, %v893
    // Predicated region
    $region62: #{tpu_custom_call.1} parent=1 // pred_check
      _
    $region63: #{tpu_custom_call.1} parent=1 // pred_check_branch
      %897 = sbr.rel (0) target = $region65
    $region64: #{tpu_custom_call.1} parent=1 // pred_region
      _
    $region65: #{tpu_custom_call.1} parent=1 // pred_fallthru
      _
    // Predicated region
    $region66: #{tpu_custom_call.1} parent=1 // pred_check
      _
    $region67: #{tpu_custom_call.1} parent=1 // pred_check_branch
      %899 = sbr.rel (0) target = $region69
    $region68: #{tpu_custom_call.1} parent=1 // pred_region
      _
    $region69: #{tpu_custom_call.1} parent=1 // pred_fallthru
      _
    %900 = vsyncpa [#allocation4], 1
    %901 = vsyncpa [#allocation6], 1
    %902 = vsyncpa [#allocation9], 1

</llo_original>
